<compile_context>
chip_gen: v7x
topology: tpu7x:2x2x1
jax: 0.10.0
libtpu: 0.0.40
codegen_flags: <defaults>
</compile_context>

<pallas_src>
import functools
import math

import jax
import jax.numpy as jnp
from jax.experimental import pallas as pl
from jax.experimental.pallas import tpu as pltpu


# ----------------------------------------------------------------------------
# Kernel
# ----------------------------------------------------------------------------
def _glu_kernel(x_ref, wc_ref, bc_ref, o_ref):
    tn = o_ref.shape[-1]
    x = x_ref[...]

    # Single fused GEMM (f32 accumulation on the MXU) + single fused bias add.
    #   columns [0:tn]    -> main (Linear1 slice)
    #   columns [tn:2*tn] -> gate pre-activation (Linear2 slice)
    y = jnp.dot(x, wc_ref[...], preferred_element_type=jnp.float32)
    y = y + bc_ref[...]

    main = y[:, :tn]
    g = y[:, tn:]
    # Exact (erf) GELU, matching nn.GELU() default.
    gate = 0.5 * g * (1.0 + jax.lax.erf(g * jnp.float32(0.7071067811865476)))

    o_ref[...] = (main * gate).astype(o_ref.dtype)


# ----------------------------------------------------------------------------
# Tiling / layout helpers (init-time, not per-call)
# ----------------------------------------------------------------------------
def _round_up(a, b):
    return (a + b - 1) // b * b


def _vmem_capacity_bytes():
    # Per-TensorCore VMEM: 128 MiB on v5e/v6e, 64 MiB on v7x.
    try:
        info = pltpu.get_tpu_info()
        for attr in ("vmem_capacity_bytes", "vmem_bytes", "vmem_size_bytes"):
            v = getattr(info, attr, None)
            if v:
                return int(v)
    except Exception:
        pass
    return 64 * 1024 * 1024  # conservative fallback (v7x per-TC)


def _pick_tiles(M, D, vmem_limit_bytes, elem_bytes=4):
    """Choose (tm, tn) so the double-buffered working set fits the VMEM budget.

    Larger tn is preferred: with the weight slab resident across the inner M
    axis, total x restream traffic is (D / tn) passes over the activations.
    """
    tm0 = min(512, _round_up(M, 8))
    if D < 128 or D % 128 != 0:
        # Small / odd feature dims: full-row blocks (block == array dim is legal).
        # TODO(synk): pad D up to a multiple of 128 in the wrapper for large odd D.
        return tm0, D

    budget = int(0.8 * vmem_limit_bytes)

    def need(tm_, tn_):
        w = 2 * D * 2 * tn_ * elem_bytes        # fused-weight buffers
        xb = 2 * tm_ * D * elem_bytes           # x double buffer
        ob = 2 * tm_ * tn_ * 4                  # f32 output double buffer
        return w + xb + ob

    for tn in (512, 256, 128):
        if D % tn:
            continue
        tm = tm0
        while tm > 128 and need(tm, tn) > budget:
            tm //= 2
        if need(tm, tn) <= budget:
            return tm, tn
    return max(tm0 // 4, 8), 128


def fuse_glu_weights(w1, b1, w2, b2, tn):
    """Block-interleave W1/W2 (and b1/b2) along the output dim so grid block j
    selects one contiguous (D, 2*tn) slab: [W1[:, j-tile] | W2[:, j-tile]].
    Call ONCE at init (rewrites the full weights in HBM), not per forward."""
    D = w1.shape[0]
    gn = D // tn
    wc = jnp.concatenate(
        [w1.reshape(D, gn, tn), w2.reshape(D, gn, tn)], axis=-1
    ).reshape(D, gn * 2 * tn)
    bc = jnp.concatenate(
        [b1.reshape(1, gn, tn), b2.reshape(1, gn, tn)], axis=-1
    ).reshape(1, gn * 2 * tn)
    return wc, bc


# ----------------------------------------------------------------------------
# Forward
# ----------------------------------------------------------------------------
def glu_forward(x, wc, bc, *, tm, tn, vmem_limit_bytes, use_bf16=False):
    """x: (B, S, D) float32.  wc: (D, 2*D) fused/interleaved weight (in, out).
    bc: (1, 2*D) fused bias.  tm/tn: tile sizes from _pick_tiles."""
    B, S, D = x.shape
    M = B * S

    x2d = x.reshape(M, D)                      # free reshape (contiguous)
    if use_bf16:
        # bf16 MXU inputs: ~2-4x matmul rate and half the weight DMA bytes.
        # Relax the numerical tolerance when enabling this.
        x2d = x2d.astype(jnp.bfloat16)
        wc = wc.astype(jnp.bfloat16)

    gm = pl.cdiv(M, tm)                        # ragged last block handled by Pallas
    gn = wc.shape[1] // (2 * tn)

    elem = 2 if use_bf16 else 4
    cost = pl.CostEstimate(
        flops=4 * M * D * D + 6 * M * D,
        transcendentals=M * D,
        # x is streamed once per weight-column block (gn passes); weights once.
        bytes_accessed=(gn * M * D + wc.size) * elem + bc.size * 4 + M * D * 4,
    )

    out2d = pl.pallas_call(
        _glu_kernel,
        out_shape=jax.ShapeDtypeStruct((M, D), x.dtype),
        grid_spec=pltpu.PrefetchScalarGridSpec(
            num_scalar_prefetch=0,
            grid=(gn, gm),                     # weight-column axis OUTER, M INNER
            in_specs=[
                # x rows stream along the inner axis (full K per block).
                pl.BlockSpec((tm, D), lambda j, i: (i, 0)),
                # Fused weight slab: block index depends only on the outer axis,
                # so it stays resident in VMEM across all inner (M) steps.
                pl.BlockSpec((D, 2 * tn), lambda j, i: (0, j)),
                pl.BlockSpec((1, 2 * tn), lambda j, i: (0, j)),
            ],
            out_specs=pl.BlockSpec((tm, tn), lambda j, i: (i, j)),
        ),
        compiler_params=pltpu.CompilerParams(
            # With gn outer, a megacore split along either axis keeps each
            # core's weight slab resident, so both axes are left parallel and
            # the compiler can engage megacore whichever axis is >= 2.
            dimension_semantics=("parallel", "parallel"),
            vmem_limit_bytes=vmem_limit_bytes,
        ),
        cost_estimate=cost,
    )(x2d, wc, bc)

    return out2d.reshape(B, S, D)


def glu_reference(x, w1, b1, w2, b2):
    main = x @ w1 + b1[0]
    g = x @ w2 + b2[0]
    gate = 0.5 * g * (1.0 + jax.lax.erf(g / jnp.sqrt(2.0).astype(g.dtype)))
    return main * gate


# ----------------------------------------------------------------------------
# Demo
# ----------------------------------------------------------------------------
if __name__ == "__main__":
    # Module only works when input_dim == hidden_dim (linear2: H->D applied to x).
    batch, seq, dim = 2, 8, 32
    key = jax.random.PRNGKey(0)
    kx, kw1, kb1, kw2, kb2 = jax.random.split(key, 5)

    x = jax.random.normal(kx, (batch, seq, dim), dtype=jnp.float32)

    # Deterministic PyTorch-style init: U(-1/sqrt(fan_in), 1/sqrt(fan_in)).
    bound = 1.0 / math.sqrt(dim)
    # Stored pre-transposed (in, out) so the kernel computes x @ W.
    w1 = jax.random.uniform(kw1, (dim, dim), jnp.float32, -bound, bound)
    b1 = jax.random.uniform(kb1, (1, dim), jnp.float32, -bound, bound)
    w2 = jax.random.uniform(kw2, (dim, dim), jnp.float32, -bound, bound)
    b2 = jax.random.uniform(kb2, (1, dim), jnp.float32, -bound, bound)

    # ---- one-time init: tile sizing + weight fusion (hoisted out of forward) ----
    M = batch * seq
    vmem_cap = _vmem_capacity_bytes()
    vmem_limit = min(int(0.85 * vmem_cap), 100 * 1024 * 1024)
    tm, tn = _pick_tiles(M, dim, vmem_limit)
    wc, bc = fuse_glu_weights(w1, b1, w2, b2, tn)

    fwd = jax.jit(
        functools.partial(glu_forward, tm=tm, tn=tn, vmem_limit_bytes=vmem_limit)
    )

    out = jax.block_until_ready(fwd(x, wc, bc))

    ref = glu_reference(x, w1, b1, w2, b2)
    assert out.shape == ref.shape, "shape mismatch vs reference"
    assert jnp.allclose(out, ref, atol=1e-5, rtol=1e-5), "mismatch vs reference"

    print("KERNEL_OK")
</pallas_src>

<mosaic_0001>
module attributes {stable_mosaic.version = 11 : i64} {
  func.func @_glu_kernel(%arg0: i32, %arg1: i32, %arg2: memref<16x32xf32, #tpu.memory_space<vmem>>, %arg3: memref<32x64xf32, #tpu.memory_space<vmem>>, %arg4: memref<1x64xf32, #tpu.memory_space<vmem>>, %arg5: memref<16x32xf32, #tpu.memory_space<vmem>>) attributes {dimension_semantics = [#tpu.dimension_semantics<parallel>, #tpu.dimension_semantics<parallel>], iteration_bounds = array<i64: 1, 1>, scalar_prefetch = 0 : i64, scratch_operands = 0 : i64, tpu.core_type = #tpu.core_type<tc>, window_params = [{transform_indices = @transform_0, window_bounds = array<i64: 16, 32>}, {transform_indices = @transform_1, window_bounds = array<i64: 32, 64>}, {transform_indices = @transform_2, window_bounds = array<i64: 1, 64>}, {transform_indices = @transform_3, window_bounds = array<i64: 16, 32>}]} {
    %c0 = arith.constant 0 : index
    %c0_0 = arith.constant 0 : index
    %0 = vector.load %arg2[%c0, %c0_0] : memref<16x32xf32, #tpu.memory_space<vmem>>, vector<16x32xf32>
    %c0_1 = arith.constant 0 : index
    %c0_2 = arith.constant 0 : index
    %1 = vector.load %arg3[%c0_1, %c0_2] : memref<32x64xf32, #tpu.memory_space<vmem>>, vector<32x64xf32>
    %cst = arith.constant dense<0.000000e+00> : vector<16x64xf32>
    %2 = tpu.matmul %0, %1, %cst {dimension_numbers = #tpu.dot_dimension_numbers<[1], [0], [0], [1], [0, 0, 1, 1], [], []>} : vector<16x32xf32>, vector<32x64xf32>, vector<16x64xf32> -> vector<16x64xf32>
    %c0_3 = arith.constant 0 : index
    %c0_4 = arith.constant 0 : index
    %3 = vector.load %arg4[%c0_3, %c0_4] : memref<1x64xf32, #tpu.memory_space<vmem>>, vector<1x64xf32>
    %4 = vector.broadcast %3 : vector<1x64xf32> to vector<16x64xf32>
    %5 = arith.addf %2, %4 : vector<16x64xf32>
    %6 = vector.extract_strided_slice %5 {offsets = [0, 0], sizes = [16, 32], strides = [1, 1]} : vector<16x64xf32> to vector<16x32xf32>
    %7 = vector.extract_strided_slice %5 {offsets = [0, 32], sizes = [16, 32], strides = [1, 1]} : vector<16x64xf32> to vector<16x32xf32>
    %cst_5 = arith.constant 5.000000e-01 : f32
    %8 = vector.broadcast %cst_5 : f32 to vector<16x32xf32>
    %9 = arith.mulf %8, %7 : vector<16x32xf32>
    %cst_6 = arith.constant 0.707106769 : f32
    %10 = vector.broadcast %cst_6 : f32 to vector<16x32xf32>
    %11 = arith.mulf %7, %10 : vector<16x32xf32>
    %12 = math.erf %11 : vector<16x32xf32>
    %cst_7 = arith.constant 1.000000e+00 : f32
    %13 = vector.broadcast %cst_7 : f32 to vector<16x32xf32>
    %14 = arith.addf %13, %12 : vector<16x32xf32>
    %15 = arith.mulf %9, %14 : vector<16x32xf32>
    %16 = arith.mulf %6, %15 : vector<16x32xf32>
    %c0_8 = arith.constant 0 : index
    %c0_9 = arith.constant 0 : index
    %17 = vector.load %arg5[%c0_8, %c0_9] : memref<16x32xf32, #tpu.memory_space<vmem>>, vector<16x32xf32>
    tpu.vector_store %arg5[%c0_8, %c0_9], %16 {strides = array<i32>} : memref<16x32xf32, #tpu.memory_space<vmem>>, vector<16x32xf32>,
    return
  }
  func.func @transform_0(%arg0: i32, %arg1: i32) -> (i32, i32) {
    %c0_i32 = arith.constant 0 : i32
    %c0_i32_0 = arith.constant 0 : i32
    return %arg1, %c0_i32 : i32, i32
  }
  func.func @transform_1(%arg0: i32, %arg1: i32) -> (i32, i32) {
    %c0_i32 = arith.constant 0 : i32
    %c0_i32_0 = arith.constant 0 : i32
    return %c0_i32, %arg0 : i32, i32
  }
  func.func @transform_2(%arg0: i32, %arg1: i32) -> (i32, i32) {
    %c0_i32 = arith.constant 0 : i32
    %c0_i32_0 = arith.constant 0 : i32
    return %c0_i32, %arg0 : i32, i32
  }
  func.func @transform_3(%arg0: i32, %arg1: i32) -> (i32, i32) {
    %c0_i32 = arith.constant 0 : i32
    return %arg1, %arg0 : i32, i32
  }
}

</mosaic_0001>

<llo_original>
// kernel: glu_forward.1
$region0: #{glu_forward.1}
  #allocation0 [shape = 'u32[]', space=smem, size = 0x4, offset = 0x4, fixed_abs, tag = 'smem constant byte address 0x4 - core index']
  #allocation1 [shape = 'u32[144,128]{1,0:T(1,128)}', space=vmem, size = 0x12000, scoped, tag = 'internal scratch']
  %s0 = inlined_call_operand.hbm [shape: f32[16,32], index: 0, kind: input, shape index: {}]
  %s1 = inlined_call_operand.hbm [shape: f32[32,64], index: 1, kind: input, shape index: {}]
  %s2 = inlined_call_operand.vmem [shape: f32[1,64], index: 2, kind: input, shape index: {}]
  %s3 = inlined_call_operand.hbm [shape: f32[16,32], index: 3, kind: output, shape index: {}]
  %s4 = sld [smem:[#allocation0]]
  $region30: #{glu_forward.1} parent=0
    _
  %s6 = ssub.s32 1, %s4
  %s7 = scalar_select 0, %s6, %s4
  $region1: #{glu_forward.1} parent=0
    #allocation2 [shape = 'u8[8192]{0}', space=vmem, size = 0x2000, scoped, tag = 'input window, operand 0, single buffered']
    #allocation3 [shape = 's32[1]{0}', space=sflag, size = 0x4, scoped, tag = 'scoped memory for glu_forward.1']
    #allocation4 [shape = 's32[1]{0}', space=sflag, size = 0x4, scoped, tag = 'scoped memory for glu_forward.1']
    #allocation5 [shape = 'u8[16384]{0}', space=vmem, size = 0x4000, scoped, tag = 'input window, operand 1, single buffered']
    #allocation6 [shape = 's32[1]{0}', space=sflag, size = 0x4, scoped, tag = 'scoped memory for glu_forward.1']
    #allocation7 [shape = 'u8[8192]{0}', space=vmem, size = 0x2000, scoped, tag = 'output window, operand 0, single buffered']
    %8 = vsyncpa [#allocation3], 0
    %9 = vsyncpa [#allocation6], 0
    %10 = vsyncpa [#allocation4], 0
    // Predicated region
    $region2: #{glu_forward.1} parent=1 // pred_check
      _
    $region3: #{glu_forward.1} parent=1 // pred_check_branch
      %12 = sbr.rel (0) target = $region5
    $region4: #{glu_forward.1} parent=1 // pred_region
      %s14 = ssub.s32 256, 256
      %15 = vsyncadd [#allocation3], %s14
      %s16 = sshll.u32 [#allocation2], 4
      %s17 = int_to_ptr.vmem [resolvable:$true] %s16
      %22 = dma.hbm_to_vmem [thread:$0]  %s0, 256, %s17, [#allocation3], 128, 128, 8
    $region5: #{glu_forward.1} parent=1 // pred_fallthru
      _
    // Predicated region
    $region6: #{glu_forward.1} parent=1 // pred_check
      _
    $region7: #{glu_forward.1} parent=1 // pred_check_branch
      %24 = sbr.rel (0) target = $region9
    $region8: #{glu_forward.1} parent=1 // pred_region
      %s26 = ssub.s32 512, 512
      %27 = vsyncadd [#allocation6], %s26
      %s28 = sshll.u32 [#allocation5], 4
      %s29 = int_to_ptr.vmem [resolvable:$true] %s28
      %34 = dma.hbm_to_vmem [thread:$0]  %s1, 512, %s29, [#allocation6], 128, 128, 8
    $region9: #{glu_forward.1} parent=1 // pred_fallthru
      _
    // Predicated region
    $region10: #{glu_forward.1} parent=1 // pred_check
      _
    $region11: #{glu_forward.1} parent=1 // pred_check_branch
      %36 = sbr.rel (0) target = $region13
    $region12: #{glu_forward.1} parent=1 // pred_region
      _
    $region13: #{glu_forward.1} parent=1 // pred_fallthru
      _
    // Predicated region
    $region14: #{glu_forward.1} parent=1 // pred_check
      _
    $region15: #{glu_forward.1} parent=1 // pred_check_branch
      %38 = sbr.rel (0) target = $region17
    $region16: #{glu_forward.1} parent=1 // pred_region
      %39 = dma.done [#allocation3], 256
    $region17: #{glu_forward.1} parent=1 // pred_fallthru
      _
    // Predicated region
    $region18: #{glu_forward.1} parent=1 // pred_check
      _
    $region19: #{glu_forward.1} parent=1 // pred_check_branch
      %41 = sbr.rel (0) target = $region21
    $region20: #{glu_forward.1} parent=1 // pred_region
      %42 = dma.done [#allocation6], 512
    $region21: #{glu_forward.1} parent=1 // pred_fallthru
      _
    %v43 = vld [vmem:[#allocation2] sm:$0xff]
    %v44 = vld [vmem:[#allocation2 + $0x8] sm:$0xff]
    %v45 = vld [vmem:[#allocation5] sm:$0xff]
    %v46 = vld [vmem:[#allocation5 + $0x8] sm:$0xff]
    %v47 = vld [vmem:[#allocation5 + $0x10] sm:$0xff]
    %v48 = vld [vmem:[#allocation5 + $0x18] sm:$0xff]
    %v49 = vld [vmem:[%s2] sm:$0x1]
    %v51 = vlaneseq
    %v52 = vshrl.u32 %v51, 7
    %v53 = vsub.s32 0, %v52
    %v54 = vrot.slane %v49, %v53
    %vm56 = vcmask 261120
    %v58 = vsel %vm56, %v43, 0
    %v61 = vsel %vm56, %v44, 0
    %63 = vmatprep.subr.mxu0 0.0
    %64 = vmatpush1.msra.mxu0 %v45
    %65 = vmatprep.subr.mxu0 0.0
    %66 = vmatpush1.msra.mxu0 %v46
    %67 = vmatprep.subr.mxu0 0.0
    %68 = vmatpush1.msra.mxu0 %v47
    %69 = vmatprep.subr.mxu0 0.0
    %70 = vmatpush1.msra.mxu0 %v48
    %71 = vmatprep.subr.mxu0 0.0
    %72 = vmatpush1.msra.mxu0 0.0
    %73 = vmatprep.subr.mxu0 0.0
    %74 = vmatpush1.msra.mxu0 0.0
    %75 = vmatprep.subr.mxu0 0.0
    %76 = vmatpush1.msra.mxu0 0.0
    %77 = vmatprep.subr.mxu0 0.0
    %78 = vmatpush1.msra.mxu0 0.0
    %79 = vmatprep.subr.mxu0 0.0
    %80 = vmatpush1.msra.mxu0 0.0
    %81 = vmatprep.subr.mxu0 0.0
    %82 = vmatpush1.msra.mxu0 0.0
    %83 = vmatprep.subr.mxu0 0.0
    %84 = vmatpush1.msra.mxu0 0.0
    %85 = vmatprep.subr.mxu0 0.0
    %86 = vmatpush1.msra.mxu0 0.0
    %87 = vmatprep.subr.mxu0 0.0
    %88 = vmatpush1.msra.mxu0 0.0
    %89 = vmatprep.subr.mxu0 0.0
    %90 = vmatpush1.msra.mxu0 0.0
    %91 = vmatprep.subr.mxu0 0.0
    %92 = vmatpush1.msra.mxu0 0.0
    %93 = vmatprep.subr.mxu0 0.0
    %94 = vmatpush1.msra.mxu0 0.0
    %95 = vmatprep.subr.mxu0 0.0
    %96 = vmatpush1.msra.mxu0 0.0
    %97 = vmatprep.subr.mxu0 0.0
    %98 = vmatpush1.msra.mxu0 0.0
    %99 = vmatprep.subr.mxu0 0.0
    %100 = vmatpush1.msra.mxu0 0.0
    %101 = vmatprep.subr.mxu0 0.0
    %102 = vmatpush1.msra.mxu0 0.0
    %103 = vmatprep.subr.mxu0 0.0
    %104 = vmatpush1.msra.mxu0 0.0
    %105 = vmatprep.subr.mxu0 0.0
    %106 = vmatpush1.msra.mxu0 0.0
    %107 = vmatprep.subr.mxu0 0.0
    %108 = vmatpush1.msra.mxu0 0.0
    %109 = vmatprep.subr.mxu0 0.0
    %110 = vmatpush1.msra.mxu0 0.0
    %111 = vmatprep.subr.mxu0 0.0
    %112 = vmatpush1.msra.mxu0 0.0
    %113 = vmatprep.subr.mxu0 0.0
    %114 = vmatpush1.msra.mxu0 0.0
    %115 = vmatprep.subr.mxu0 0.0
    %116 = vmatpush1.msra.mxu0 0.0
    %117 = vmatprep.subr.mxu0 0.0
    %118 = vmatpush1.msra.mxu0 0.0
    %119 = vmatprep.subr.mxu0 0.0
    %120 = vmatpush1.msra.mxu0 0.0
    %121 = vmatprep.subr.mxu0 0.0
    %122 = vmatpush1.msra.mxu0 0.0
    %123 = vmatprep.subr.mxu0 0.0
    %124 = vmatpush1.msra.mxu0 0.0
    %125 = vmatprep.subr.mxu0 0.0
    %126 = vmatpush1.msra.mxu0 0.0
    %127 = vmatprep.mubr.f32.mxu0 0.0
    %128 = vmatmul.mubr.f32.gmra.mrb[0].mxu0 %v58
    %v129 = vpop.f32.mrb[0].mxu0
    %v130 = vadd.f32 %v54, %v129
    %v131 = vpop.f32.mrb[0].mxu0
    %132 = vmatprep.mubr.f32.mxu0 0.0
    %133 = vmatmul.mubr.f32.gmra.mrb[0].mxu0 %v61
    %v134 = vpop.f32.mrb[0].mxu0
    %v135 = vadd.f32 %v54, %v134
    %v136 = vpop.f32.mrb[0].mxu0
    %137 = vdwg.mxu0
    %v138 = vmul.f32 %v130, 0.5
    %v139 = vmul.f32 %v135, 0.5
    %v140 = vmul.f32 %v130, 0.70710677
    %v141 = vmul.f32 %v135, 0.70710677
    %v142 = verf.f32.pop %v140
    %v143 = verf.f32.pop %v141
    %v144 = vadd.f32 %v142, 1.0
    %v145 = vadd.f32 %v143, 1.0
    %v146 = vmul.f32 %v138, %v144
    %v147 = vmul.f32 %v139, %v145
    %150 = vrot.lane.b32.xlu0 %v146, 96
    %v151 = vpop.permute.xlu0 %150
    %152 = vrot.lane.b32.xlu0 %v147, 96
    %v153 = vpop.permute.xlu0 %152
    %v156 = vmul.f32 %v130, %v151
    %v157 = vmul.f32 %v135, %v153
    %158 = vst.msk [vmem:[#allocation7] sm:$0xff] %vm56, %v156
    %159 = vst.msk [vmem:[#allocation7 + $0x8] sm:$0xff] %vm56, %v157
    // Predicated region
    $region22: #{glu_forward.1} parent=1 // pred_check
      _
    $region23: #{glu_forward.1} parent=1 // pred_check_branch
      %161 = sbr.rel (0) target = $region25
    $region24: #{glu_forward.1} parent=1 // pred_region
      %s163 = ssub.s32 256, 256
      %164 = vsyncadd [#allocation4], %s163
      %s165 = sshll.u32 [#allocation7], 4
      %s166 = int_to_ptr.vmem [resolvable:$true] %s165
      %171 = dma.vmem_to_hbm [thread:$0]  %s166, 256, %s3, [#allocation4], 128, 128, 8
    $region25: #{glu_forward.1} parent=1 // pred_fallthru
      _
    // Predicated region
    $region26: #{glu_forward.1} parent=1 // pred_check
      _
    $region27: #{glu_forward.1} parent=1 // pred_check_branch
      %173 = sbr.rel (0) target = $region29
    $region28: #{glu_forward.1} parent=1 // pred_region
      %174 = dma.done [#allocation4], 256
    $region29: #{glu_forward.1} parent=1 // pred_fallthru
      _
    %175 = vsyncpa [#allocation3], 1
    %176 = vsyncpa [#allocation6], 1
    %177 = vsyncpa [#allocation4], 1

</llo_original>
